<compile_context>
chip_gen: v6e
topology: v6e:2x2x1
jax: 0.10.0
libtpu: 0.0.40
codegen_flags: <defaults>
</compile_context>

<pallas_src>
import jax
import jax.numpy as jnp
from jax import lax
from jax.experimental import pallas as pl
from jax.experimental.pallas import tpu as pltpu


def _round_up(v, m):
    return ((v + m - 1) // m) * m


def _conv1x1_nchw_kernel(x_ref, w_ref, b_ref, o_ref):
    # x_ref: (C_in, THW) bf16 | w_ref: (C_in, C_pad) bf16
    # b_ref: (1, C_pad)  f32  | o_ref: (THW, C_pad)  f32
    acc = lax.dot_general(
        x_ref[...], w_ref[...],
        dimension_numbers=(((0,), (0,)), ((), ())),   # contract channel dim
        preferred_element_type=jnp.float32,
    )                                                 # -> (THW, C_pad), NHWC order
    o_ref[...] = (acc + b_ref[...]).astype(o_ref.dtype)


def _conv1x1_nchw_pallas(x3, w, b, *, tile_hw):
    """x3: (N, C_in, HW_pad) bf16; w: (C_in, C_pad) bf16; b: (1, C_pad) f32.

    Returns (N, HW_pad, C_pad) f32 (channels-last, i.e. already "permuted").
    """
    N, C_in, HW_pad = x3.shape
    C_pad = w.shape[1]
    assert HW_pad % tile_hw == 0
    n_hw = HW_pad // tile_hw

    # VMEM budget: double-buffered x/out blocks + (double-buffered) weight/bias.
    vmem_bytes = 2 * (C_in * tile_hw * 2          # x block (bf16)
                      + tile_hw * C_pad * 4       # out block (f32)
                      + C_in * C_pad * 2          # weight (bf16)
                      + C_pad * 4)                # bias (f32)
    vmem_bytes = min(max(vmem_bytes + (2 << 20), 4 << 20), 32 << 20)

    cost = pl.CostEstimate(
        flops=2 * N * HW_pad * C_in * C_pad,
        transcendentals=0,
        bytes_accessed=(N * C_in * HW_pad * 2     # x (bf16)
                        + C_in * C_pad * 2        # weight
                        + C_pad * 4               # bias
                        + N * HW_pad * C_pad * 4),  # out (f32)
    )

    return pl.pallas_call(
        _conv1x1_nchw_kernel,
        out_shape=jax.ShapeDtypeStruct((N, HW_pad, C_pad), jnp.float32),
        grid_spec=pltpu.PrefetchScalarGridSpec(
            num_scalar_prefetch=0,
            grid=(N, n_hw),
            in_specs=[
                # x block: one batch element, full channels, one spatial tile.
                pl.BlockSpec((None, C_in, tile_hw), lambda n, j: (n, 0, j)),
                # Weight / bias: resident across the whole grid.
                pl.BlockSpec((C_in, C_pad), lambda n, j: (0, 0)),
                pl.BlockSpec((1, C_pad), lambda n, j: (0, 0)),
            ],
            out_specs=pl.BlockSpec((None, tile_hw, C_pad), lambda n, j: (n, j, 0)),
        ),
        compiler_params=pltpu.CompilerParams(
            dimension_semantics=("parallel", "parallel"),
            vmem_limit_bytes=vmem_bytes,
        ),
        cost_estimate=cost,
    )(x3, w, b)


def landmark_head(x_nchw, weight, bias, num_anchors, *, tile_hw_max=512):
    """Forward pass of LandmarkHead.

    x_nchw: (N, C_in, H, W) float32
    weight: (C_out, C_in) float32  (conv1x1 weight with kernel dims squeezed)
    bias:   (C_out,) float32
    returns: (N, H*W*num_anchors, 10) float32
    """
    N, C_in, H, W = x_nchw.shape
    C_out = weight.shape[0]
    assert C_out == num_anchors * 10
    HW = H * W

    # Spatial tile: lane-aligned (multiple of 128), as large as tile_hw_max.
    tile_hw = min(tile_hw_max, _round_up(HW, 128))
    HW_pad = _round_up(HW, tile_hw)

    # Keep native NCHW layout; (N, C_in, H, W) -> (N, C_in, HW) is a free bitcast.
    x3 = x_nchw.reshape(N, C_in, HW)
    if HW_pad != HW:
        x3 = jnp.pad(x3, ((0, 0), (0, 0), (0, HW_pad - HW)))
    x3 = x3.astype(jnp.bfloat16)

    # Lane-dense output: pad C_out (=A*10) up to a multiple of 128 columns.
    C_pad = _round_up(C_out, 128)
    w = jnp.zeros((C_in, C_pad), jnp.bfloat16)
    w = w.at[:, :C_out].set(weight.T.astype(jnp.bfloat16))
    b = jnp.zeros((1, C_pad), jnp.float32)
    b = b.at[:, :C_out].set(bias.astype(jnp.float32))

    out = _conv1x1_nchw_pallas(x3, w, b, tile_hw=tile_hw)   # (N, HW_pad, C_pad)

    # Slice pads off BEFORE the view so the (N, H*W*A, 10) semantics match
    # permute(0,2,3,1).view(N, -1, 10).
    out = out[:, :HW, :C_out]
    return out.reshape(N, HW * num_anchors, 10)


if __name__ == "__main__":
    # Small shapes consistent with the module.
    N, C_in, H, W = 2, 64, 16, 16
    num_anchors = 3
    C_out = num_anchors * 10  # 30

    key = jax.random.PRNGKey(0)
    kx, kw, kb = jax.random.split(key, 3)

    x = jax.random.normal(kx, (N, C_in, H, W), dtype=jnp.float32)
    # Deterministic init mimicking PyTorch Conv2d default (uniform +-1/sqrt(fan_in)).
    bound = 1.0 / (C_in ** 0.5)
    weight = jax.random.uniform(kw, (C_out, C_in), jnp.float32, -bound, bound)
    bias = jax.random.uniform(kb, (C_out,), jnp.float32, -bound, bound)

    out = landmark_head(x, weight, bias, num_anchors)
    out = jax.block_until_ready(out)
    assert out.shape == (N, H * W * num_anchors, 10), out.shape

    # Cross-check against a plain-JAX f32 reference of the same forward pass
    # (kernel uses bf16 inputs -> looser tolerance).
    ref = jnp.einsum("nchw,oc->nhwo", x, weight) + bias
    ref = ref.reshape(N, H * W * num_anchors, 10)
    assert jnp.allclose(out, ref, atol=5e-2, rtol=5e-2), float(
        jnp.max(jnp.abs(out - ref)))

    print("KERNEL_OK")
</pallas_src>

<mosaic_0001>
module attributes {stable_mosaic.version = 11 : i64} {
  func.func @_conv1x1_nchw_kernel(%arg0: i32, %arg1: i32, %arg2: memref<1x64x256xbf16, #tpu.memory_space<vmem>>, %arg3: memref<64x128xbf16, #tpu.memory_space<vmem>>, %arg4: memref<1x128xf32, #tpu.memory_space<vmem>>, %arg5: memref<1x256x128xf32, #tpu.memory_space<vmem>>) attributes {dimension_semantics = [#tpu.dimension_semantics<parallel>, #tpu.dimension_semantics<parallel>], iteration_bounds = array<i64: 2, 1>, scalar_prefetch = 0 : i64, scratch_operands = 0 : i64, tpu.core_type = #tpu.core_type<tc>, window_params = [{transform_indices = @transform_0, window_bounds = array<i64: 1, 64, 256>}, {pipeline_mode = #tpu.pipeline_mode<synchronous>, transform_indices = @transform_1, window_bounds = array<i64: 64, 128>}, {pipeline_mode = #tpu.pipeline_mode<synchronous>, transform_indices = @transform_2, window_bounds = array<i64: 1, 128>}, {transform_indices = @transform_3, window_bounds = array<i64: 1, 256, 128>}]} {
    %c0 = arith.constant 0 : index
    %c0_0 = arith.constant 0 : index
    %c0_1 = arith.constant 0 : index
    %0 = vector.load %arg2[%c0, %c0_0, %c0_1] : memref<1x64x256xbf16, #tpu.memory_space<vmem>>, vector<1x64x256xbf16>
    %1 = vector.shape_cast %0 : vector<1x64x256xbf16> to vector<64x256xbf16>
    %c0_2 = arith.constant 0 : index
    %c0_3 = arith.constant 0 : index
    %2 = vector.load %arg3[%c0_2, %c0_3] : memref<64x128xbf16, #tpu.memory_space<vmem>>, vector<64x128xbf16>
    %cst = arith.constant dense<0.000000e+00> : vector<256x128xf32>
    %3 = tpu.matmul %1, %2, %cst {dimension_numbers = #tpu.dot_dimension_numbers<[0], [0], [1], [1], [0, 1, 1, 1], [], []>} : vector<64x256xbf16>, vector<64x128xbf16>, vector<256x128xf32> -> vector<256x128xf32>
    %c0_4 = arith.constant 0 : index
    %c0_5 = arith.constant 0 : index
    %4 = vector.load %arg4[%c0_4, %c0_5] : memref<1x128xf32, #tpu.memory_space<vmem>>, vector<1x128xf32>
    %5 = vector.broadcast %4 : vector<1x128xf32> to vector<256x128xf32>
    %6 = arith.addf %3, %5 : vector<256x128xf32>
    %c0_6 = arith.constant 0 : index
    %c0_7 = arith.constant 0 : index
    %c0_8 = arith.constant 0 : index
    %7 = vector.load %arg5[%c0_6, %c0_7, %c0_8] : memref<1x256x128xf32, #tpu.memory_space<vmem>>, vector<1x256x128xf32>
    %8 = vector.shape_cast %7 : vector<1x256x128xf32> to vector<256x128xf32>
    %9 = vector.shape_cast %6 : vector<256x128xf32> to vector<1x256x128xf32>
    tpu.vector_store %arg5[%c0_6, %c0_7, %c0_8], %9 {strides = array<i32>} : memref<1x256x128xf32, #tpu.memory_space<vmem>>, vector<1x256x128xf32>,
    return
  }
  func.func @transform_0(%arg0: i32, %arg1: i32) -> (i32, i32, i32) {
    %c0_i32 = arith.constant 0 : i32
    %c0_i32_0 = arith.constant 0 : i32
    return %arg0, %c0_i32, %arg1 : i32, i32, i32
  }
  func.func @transform_1(%arg0: i32, %arg1: i32) -> (i32, i32) {
    %c0_i32 = arith.constant 0 : i32
    %c0_i32_0 = arith.constant 0 : i32
    %c0_i32_1 = arith.constant 0 : i32
    return %c0_i32, %c0_i32_0 : i32, i32
  }
  func.func @transform_2(%arg0: i32, %arg1: i32) -> (i32, i32) {
    %c0_i32 = arith.constant 0 : i32
    %c0_i32_0 = arith.constant 0 : i32
    %c0_i32_1 = arith.constant 0 : i32
    return %c0_i32, %c0_i32_0 : i32, i32
  }
  func.func @transform_3(%arg0: i32, %arg1: i32) -> (i32, i32, i32) {
    %c0_i32 = arith.constant 0 : i32
    %c0_i32_0 = arith.constant 0 : i32
    return %arg0, %arg1, %c0_i32 : i32, i32, i32
  }
}

</mosaic_0001>

<llo_original>
// kernel: tpu_custom_call.1
$region0: #{tpu_custom_call.1}
  #allocation0 [shape = 'u32[]', space=smem, size = 0x4, offset = 0x4, fixed_abs, tag = 'smem constant byte address 0x4 - core index']
  #allocation1 [shape = 'u32[144,128]{1,0:T(1,128)}', space=vmem, size = 0x12000, scoped, tag = 'internal scratch']
  %s0 = inlined_call_operand.hbm [shape: bf16[2,64,256], index: 0, kind: input, shape index: {}]
  %s1 = inlined_call_operand.hbm [shape: bf16[64,128], index: 1, kind: input, shape index: {}]
  %s2 = inlined_call_operand.vmem [shape: f32[1,128], index: 2, kind: input, shape index: {}]
  %s3 = inlined_call_operand.hbm [shape: f32[2,256,128], index: 3, kind: output, shape index: {}]
  %s4 = sld [smem:[#allocation0]]
  $region53: #{tpu_custom_call.1} parent=0
    _
  %s6 = ssub.s32 1, %s4
  %s7 = scalar_select 0, %s6, %s4
  $region1: #{tpu_custom_call.1} parent=0
    #allocation2 [shape = 'u8[65536]{0}', space=vmem, size = 0x10000, scoped, tag = 'input window, operand 0']
    #allocation3 [shape = 's32[2]{0}', space=sflag, size = 0x8, scoped, tag = 'scoped memory for tpu_custom_call.1']
    #allocation4 [shape = 's32[2]{0}', space=sflag, size = 0x8, scoped, tag = 'scoped memory for tpu_custom_call.1']
    #allocation5 [shape = 'u8[16384]{0}', space=vmem, size = 0x4000, scoped, tag = 'input window, operand 1, single buffered']
    #allocation6 [shape = 's32[1]{0}', space=sflag, size = 0x4, scoped, tag = 'scoped memory for tpu_custom_call.1']
    #allocation7 [shape = 'u8[262144]{0}', space=vmem, size = 0x40000, scoped, tag = 'output window, operand 0']
    %8 = vsyncpa [#allocation3], 0
    %s9 = scalar_lea.sflag [#allocation3], 1
    %10 = vsyncpa %s9, 0
    %11 = vsyncpa [#allocation6], 0
    %12 = vsyncpa [#allocation4], 0
    %s13 = scalar_lea.sflag [#allocation4], 1
    %14 = vsyncpa %s13, 0
    loop: start=0, step=1, limit=4
    $region2: #{tpu_custom_call.1} parent=1 // loop_pre_header
      _
    $region3: #{tpu_custom_call.1} parent=1 // loop_header
      %s16 = sphi 0, %s20
      %p17 = scmp.ge.s32.totalorder %s16, 4
      %s23 = sphi 0, %s35
      %s24 = sphi 0, %s31
      %s25 = sphi 0, %s23
      %s26 = sphi 0, %s24
      %s27 = sphi 0, %s25
      %s28 = sphi 0, %s26
      %s40 = sphi 0, %s42
      %s43 = sphi 0, %s40
      %s44 = sphi 0, %s43
      %s60 = sphi 0, %s44
      %s64 = sphi 0, %s64
      %s66 = sphi 0, %s64
      %s67 = sphi 0, %s66
      %s81 = sphi 0, %s67
      %s85 = sphi 0, %s85
      %s87 = sphi 0, %s85
      %s88 = sphi 0, %s87
      %s102 = sphi 0, %s88
      %s110 = sphi 0, %s112
      %s113 = sphi 0, %s110
      %s114 = sphi 0, %s113
      %s130 = sphi 0, %s114
    $region4: #{tpu_custom_call.1} parent=1 // loop_header_branch
      %19 = sbr.rel (%p17) target = $region8
    $region5: #{tpu_custom_call.1} parent=1 // loop_body
      %s21 = ssub.s32 %s16, 1
      %s22 = ssub.s32 %s16, 2
      %s29 = sadd.s32 1, %s24
      %p30 = scmp.ge.s32.totalorder %s29, 1
      %s31 = scalar_select %p30, 0, %s29
      %s32 = sadd.s32 1, %s23
      %s33 = scalar_select %p30, %s32, %s23
      %p34 = scmp.ge.s32.totalorder %s33, 2
      %s35 = scalar_select %p34, 0, %s33
      %s36 = ssub.s32 %s23, %s35
      %s37 = ssub.s32 %s24, %s31
      %s38 = sor.u32 %s36, %s37
      %p39 = scmp.eq.s32.totalorder %s38, 0
      %s41 = sadd.s32 %s40, 1
      %s42 = scalar_select %p39, %s40, %s41
      %p45 = pneg %p39
      %p46 = scmp.eq.s32.totalorder %s16, 1
      %p47 = por %p45, %p46
      %p48 = scmp.ne.s32.totalorder %s40, %s43
      %p49 = scmp.eq.s32.totalorder %s16, 0
      %p50 = por %p48, %p49
      %p51 = scmp.ne.s32.totalorder %s40, %s43
      %p52 = scmp.eq.s32.totalorder %s21, 1
      %p53 = por %p51, %p52
      %p54 = scmp.ne.s32.totalorder %s43, %s44
      %p55 = scmp.eq.s32.totalorder %s21, 0
      %p56 = por %p54, %p55
      %p57 = scmp.ne.s32.totalorder %s43, %s44
      %p58 = scmp.eq.s32.totalorder %s22, 1
      %p59 = por %p57, %p58
      %p61 = scmp.ne.s32.totalorder %s44, %s60
      %p62 = scmp.eq.s32.totalorder %s22, 0
      %p63 = por %p61, %p62
      %s65 = sadd.s32 %s64, 1
      %p68 = scmp.eq.s32.totalorder %s16, 1
      %p69 = scmp.ne.s32.totalorder %s64, %s66
      %p70 = scmp.eq.s32.totalorder %s16, 0
      %p71 = por %p69, %p70
      %p72 = scmp.ne.s32.totalorder %s64, %s66
      %p73 = scmp.eq.s32.totalorder %s21, 1
      %p74 = por %p72, %p73
      %p75 = scmp.ne.s32.totalorder %s66, %s67
      %p76 = scmp.eq.s32.totalorder %s21, 0
      %p77 = por %p75, %p76
      %p78 = scmp.ne.s32.totalorder %s66, %s67
      %p79 = scmp.eq.s32.totalorder %s22, 1
      %p80 = por %p78, %p79
      %p82 = scmp.ne.s32.totalorder %s67, %s81
      %p83 = scmp.eq.s32.totalorder %s22, 0
      %p84 = por %p82, %p83
      %s86 = sadd.s32 %s85, 1
      %p89 = scmp.eq.s32.totalorder %s16, 1
      %p90 = scmp.ne.s32.totalorder %s85, %s87
      %p91 = scmp.eq.s32.totalorder %s16, 0
      %p92 = por %p90, %p91
      %p93 = scmp.ne.s32.totalorder %s85, %s87
      %p94 = scmp.eq.s32.totalorder %s21, 1
      %p95 = por %p93, %p94
      %p96 = scmp.ne.s32.totalorder %s87, %s88
      %p97 = scmp.eq.s32.totalorder %s21, 0
      %p98 = por %p96, %p97
      %p99 = scmp.ne.s32.totalorder %s87, %s88
      %p100 = scmp.eq.s32.totalorder %s22, 1
      %p101 = por %p99, %p100
      %p103 = scmp.ne.s32.totalorder %s88, %s102
      %p104 = scmp.eq.s32.totalorder %s22, 0
      %p105 = por %p103, %p104
      %s106 = ssub.s32 %s23, %s35
      %s107 = ssub.s32 %s24, %s31
      %s108 = sor.u32 %s106, %s107
      %p109 = scmp.eq.s32.totalorder %s108, 0
      %s111 = sadd.s32 %s110, 1
      %s112 = scalar_select %p109, %s110, %s111
      %p115 = pneg %p109
      %p116 = scmp.eq.s32.totalorder %s16, 1
      %p117 = por %p115, %p116
      %p118 = scmp.ne.s32.totalorder %s110, %s113
      %p119 = scmp.eq.s32.totalorder %s16, 0
      %p120 = por %p118, %p119
      %p121 = scmp.ne.s32.totalorder %s110, %s113
      %p122 = scmp.eq.s32.totalorder %s21, 1
      %p123 = por %p121, %p122
      %p124 = scmp.ne.s32.totalorder %s113, %s114
      %p125 = scmp.eq.s32.totalorder %s21, 0
      %p126 = por %p124, %p125
      %p127 = scmp.ne.s32.totalorder %s113, %s114
      %p128 = scmp.eq.s32.totalorder %s22, 1
      %p129 = por %p127, %p128
      %p131 = scmp.ne.s32.totalorder %s114, %s130
      %p132 = scmp.eq.s32.totalorder %s22, 0
      %p133 = por %p131, %p132
      %p134 = scmp.le.s32.totalorder 1, %s16
      %p135 = scmp.lt.s32.totalorder %s16, 3
      %p136 = pnand %p134, %p135
      %p137 = pneg %p136
      // Predicated region
      $region9: #{tpu_custom_call.1} parent=5 // pred_check
        _
      $region10: #{tpu_custom_call.1} parent=5 // pred_check_branch
        %139 = sbr.rel (%p136) target = $region12
      $region11: #{tpu_custom_call.1} parent=5 // pred_region
        %s140 = ssub.s32 %s16, 1
        // Predicated region
        $region13: #{tpu_custom_call.1} parent=11 // pred_check
          %p141 = pneg %p77
        $region14: #{tpu_custom_call.1} parent=11 // pred_check_branch
          %143 = sbr.rel (%p141) target = $region16
        $region15: #{tpu_custom_call.1} parent=11 // pred_region
          %s145 = ssub.s32 512, 512
          %146 = vsyncadd [#allocation6], %s145
          %s147 = sshll.u32 [#allocation5], 4
          %s148 = int_to_ptr.vmem [resolvable:$true] %s147
          %153 = dma.hbm_to_vmem [thread:$0]  %s1, 512, %s148, [#allocation6], 64, 64, 4
        $region16: #{tpu_custom_call.1} parent=11 // pred_fallthru
          _
        // Predicated region
        $region17: #{tpu_custom_call.1} parent=11 // pred_check
          %p154 = pneg %p98
        $region18: #{tpu_custom_call.1} parent=11 // pred_check_branch
          %156 = sbr.rel (%p154) target = $region20
        $region19: #{tpu_custom_call.1} parent=11 // pred_region
          _
        $region20: #{tpu_custom_call.1} parent=11 // pred_fallthru
          _
      $region12: #{tpu_custom_call.1} parent=5 // pred_fallthru
        _
      %p157 = scmp.lt.s32.totalorder %s16, 2
      // Predicated region
      $region21: #{tpu_custom_call.1} parent=5 // pred_check
        %p158 = pneg %p157
      $region22: #{tpu_custom_call.1} parent=5 // pred_check_branch
        %160 = sbr.rel (%p158) target = $region24
      $region23: #{tpu_custom_call.1} parent=5 // pred_region
        // Predicated region
        $region25: #{tpu_custom_call.1} parent=23 // pred_check
          %p161 = pneg %p50
        $region26: #{tpu_custom_call.1} parent=23 // pred_check_branch
          %163 = sbr.rel (%p161) target = $region28
        $region27: #{tpu_custom_call.1} parent=23 // pred_region
          %s164 = sand.u32 %s40, 1
          %s165 = scalar_lea.sflag [#allocation3], %s164
          %s166 = sand.u32 %s40, 1
          %s167 = smul.addr %s166, 64
          %s168 = scalar_lea.vmem [#allocation2], %s167
          %s169 = smul.u32 2, %s24
          %s171 = ssub.s32 1024, 1024
          %172 = vsyncadd %s165, %s171
          %s173 = smul.addr %s23, 16
          %s174 = sadd.s32 %s169, %s173
          %s175 = smul.addr %s174, 64
          %s176 = scalar_lea.hbm %s0, %s175
          %s177 = sshll.u32 %s168, 4
          %s178 = int_to_ptr.vmem [resolvable:$true] %s177
          %183 = dma.hbm_to_vmem [thread:$0]  %s176, 1024, %s178, %s165, 128, 128, 8
        $region28: #{tpu_custom_call.1} parent=23 // pred_fallthru
          _
      $region24: #{tpu_custom_call.1} parent=5 // pred_fallthru
        _
      %p184 = scmp.le.s32.totalorder 1, %s16
      %p185 = scmp.lt.s32.totalorder %s16, 3
      %p186 = pnand %p184, %p185
      %p187 = pneg %p186
      // Predicated region
      $region29: #{tpu_custom_call.1} parent=5 // pred_check
        _
      $region30: #{tpu_custom_call.1} parent=5 // pred_check_branch
        %189 = sbr.rel (%p186) target = $region32
      $region31: #{tpu_custom_call.1} parent=5 // pred_region
        %s190 = ssub.s32 %s16, 1
        %s191 = sand.u32 %s43, 1
        %s192 = scalar_lea.sflag [#allocation3], %s191
        %s193 = sand.u32 %s43, 1
        %s194 = smul.addr %s193, 64
        %s195 = scalar_lea.vmem [#allocation2], %s194
        // Predicated region
        $region33: #{tpu_custom_call.1} parent=31 // pred_check
          %p196 = pneg %p56
        $region34: #{tpu_custom_call.1} parent=31 // pred_check_branch
          %198 = sbr.rel (%p196) target = $region36
        $region35: #{tpu_custom_call.1} parent=31 // pred_region
          %199 = dma.done %s192, 1024
        $region36: #{tpu_custom_call.1} parent=31 // pred_fallthru
          _
        // Predicated region
        $region37: #{tpu_custom_call.1} parent=31 // pred_check
          %p200 = pneg %p77
        $region38: #{tpu_custom_call.1} parent=31 // pred_check_branch
          %202 = sbr.rel (%p200) target = $region40
        $region39: #{tpu_custom_call.1} parent=31 // pred_region
          %203 = dma.done [#allocation6], 512
        $region40: #{tpu_custom_call.1} parent=31 // pred_fallthru
          _
        %s204 = sand.u32 %s43, 1
        %s205 = scalar_lea.sflag [#allocation3], %s204
        %s206 = sand.u32 %s43, 1
        %s207 = smul.addr %s206, 64
        %s208 = scalar_lea.vmem [#allocation2], %s207
        %p209 = pneg %p56
        %p210 = pneg %p53
        %p211 = pneg %p77
        %p212 = pneg %p74
        %p213 = pneg %p98
        %p214 = pneg %p95
        %p215 = pneg %p126
        %p216 = pneg %p123
        %s217 = sand.u32 %s113, 1
        %s218 = scalar_lea.sflag [#allocation4], %s217
        %s219 = sand.u32 %s113, 1
        %s220 = smul.addr %s219, 256
        %s221 = scalar_lea.vmem [#allocation7], %s220
        %s222 = smul.u32 2, %s26
        %s223 = smul.u32 32, %s26
        %v225 = vld [vmem:[%s195] sm:$0xff]
        %v226 = vld [vmem:[%s195 + $0x8] sm:$0xff]
        %v227 = vld [vmem:[%s195 + $0x10] sm:$0xff]
        %v228 = vld [vmem:[%s195 + $0x18] sm:$0xff]
        %v229 = vld [vmem:[%s195 + $0x20] sm:$0xff]
        %v230 = vld [vmem:[%s195 + $0x28] sm:$0xff]
        %v231 = vld [vmem:[%s195 + $0x30] sm:$0xff]
        %v232 = vld [vmem:[%s195 + $0x38] sm:$0xff]
        %v233 = vld [vmem:[#allocation5] sm:$0xf]
        %v234 = vld [vmem:[#allocation5 + $0x4] sm:$0xf]
        %v235 = vld [vmem:[#allocation5 + $0x8] sm:$0xf]
        %v236 = vld [vmem:[#allocation5 + $0xc] sm:$0xf]
        %v237 = vld [vmem:[#allocation5 + $0x10] sm:$0xf]
        %v238 = vld [vmem:[#allocation5 + $0x14] sm:$0xf]
        %v239 = vld [vmem:[#allocation5 + $0x18] sm:$0xf]
        %v240 = vld [vmem:[#allocation5 + $0x1c] sm:$0xf]
        %v241 = vld [vmem:[%s2] sm:$0x1]
        %v243 = vlaneseq
        %v244 = vshrl.u32 %v243, 7
        %v245 = vsub.s32 0, %v244
        %v246 = vrot.slane %v241, %v245
        %v256 = vunpack.c.l.b16 %v225
        %v257 = vunpack.c.h.b16 %v225
        %v258 = vunpack.c.l.b16 %v226
        %v259 = vunpack.c.h.b16 %v226
        %v260 = vunpack.c.l.b16 %v227
        %v261 = vunpack.c.h.b16 %v227
        %v262 = vunpack.c.l.b16 %v228
        %v263 = vunpack.c.h.b16 %v228
        %v264 = vunpack.c.l.b16 %v229
        %v265 = vunpack.c.h.b16 %v229
        %v266 = vunpack.c.l.b16 %v230
        %v267 = vunpack.c.h.b16 %v230
        %v268 = vunpack.c.l.b16 %v231
        %v269 = vunpack.c.h.b16 %v231
        %v270 = vunpack.c.l.b16 %v232
        %v271 = vunpack.c.h.b16 %v232
        %v272 = vpack.c.b16 %v258, %v256
        %v273 = vpack.c.b16 %v259, %v257
        %v274 = vpack.c.b16 %v262, %v260
        %v275 = vpack.c.b16 %v263, %v261
        %v276 = vpack.c.b16 %v266, %v264
        %v277 = vpack.c.b16 %v267, %v265
        %v278 = vpack.c.b16 %v270, %v268
        %v279 = vpack.c.b16 %v271, %v269
        %288 = vxpose.xlu0.c.b16.start [1/8] %v272, 128
        %289 = vxpose.xlu0.c.b16.cont [2/8] %v274, 128
        %290 = vxpose.xlu0.c.b16.cont [3/8] %v276, 128
        %291 = vxpose.xlu0.c.b16.cont [4/8] %v278, 128
        %292 = vxpose.xlu0.c.b16.cont [5/8] 0, 128
        %293 = vxpose.xlu0.c.b16.cont [6/8] 0, 128
        %294 = vxpose.xlu0.c.b16.cont [7/8] 0, 128
        %295 = vxpose.xlu0.c.b16.end [8/8] 0, 128
        %v296 = vpop.trf.xlu0
        %v297 = vpop.trf.xlu0
        %v298 = vpop.trf.xlu0
        %v299 = vpop.trf.xlu0
        %v300 = vpop.trf.xlu0
        %v301 = vpop.trf.xlu0
        %v302 = vpop.trf.xlu0
        %v303 = vpop.trf.xlu0
        %304 = vxpose.xlu0.c.b16.start [1/8] %v273, 128
        %305 = vxpose.xlu0.c.b16.cont [2/8] %v275, 128
        %306 = vxpose.xlu0.c.b16.cont [3/8] %v277, 128
        %307 = vxpose.xlu0.c.b16.cont [4/8] %v279, 128
        %308 = vxpose.xlu0.c.b16.cont [5/8] 0, 128
        %309 = vxpose.xlu0.c.b16.cont [6/8] 0, 128
        %310 = vxpose.xlu0.c.b16.cont [7/8] 0, 128
        %311 = vxpose.xlu0.c.b16.end [8/8] 0, 128
        %v312 = vpop.trf.xlu0
        %v313 = vpop.trf.xlu0
        %v314 = vpop.trf.xlu0
        %v315 = vpop.trf.xlu0
        %v316 = vpop.trf.xlu0
        %v317 = vpop.trf.xlu0
        %v318 = vpop.trf.xlu0
        %v319 = vpop.trf.xlu0
        %v328 = vunpack.c.l.b16 %v233
        %v329 = vunpack.c.l.b16 %v234
        %v330 = vunpack.c.l.b16 %v235
        %v331 = vunpack.c.l.b16 %v236
        %v332 = vunpack.c.l.b16 %v237
        %v333 = vunpack.c.l.b16 %v238
        %v334 = vunpack.c.l.b16 %v239
        %v335 = vunpack.c.l.b16 %v240
        %v336 = vpack.c.b16 %v329, %v328
        %v337 = vpack.c.b16 %v331, %v330
        %v338 = vpack.c.b16 %v333, %v332
        %v339 = vpack.c.b16 %v335, %v334
        %vm344 = vcmask 523264
        %v346 = vsel %vm344, %v296, 0
        %v349 = vsel %vm344, %v297, 0
        %v352 = vsel %vm344, %v298, 0
        %v355 = vsel %vm344, %v299, 0
        %v358 = vsel %vm344, %v300, 0
        %v361 = vsel %vm344, %v301, 0
        %v364 = vsel %vm344, %v302, 0
        %v367 = vsel %vm344, %v303, 0
        %v370 = vsel %vm344, %v312, 0
        %v373 = vsel %vm344, %v313, 0
        %v376 = vsel %vm344, %v314, 0
        %v379 = vsel %vm344, %v315, 0
        %v382 = vsel %vm344, %v316, 0
        %v385 = vsel %vm344, %v317, 0
        %v388 = vsel %vm344, %v318, 0
        %v391 = vsel %vm344, %v319, 0
        %393 = vmatprep.subr.bf16.mxu0 0
        %394 = vmatpush1.bf16.msra.mxu0 0
        %395 = vmatprep.subr.bf16.mxu0 0
        %396 = vmatpush1.bf16.msra.mxu0 0
        %397 = vmatprep.subr.bf16.mxu0 0
        %398 = vmatpush1.bf16.msra.mxu0 0
        %399 = vmatprep.subr.bf16.mxu0 0
        %400 = vmatpush1.bf16.msra.mxu0 0
        %401 = vmatprep.subr.bf16.mxu0 0
        %402 = vmatpush1.bf16.msra.mxu0 %v339
        %403 = vmatprep.subr.bf16.mxu0 0
        %404 = vmatpush1.bf16.msra.mxu0 %v338
        %405 = vmatprep.subr.bf16.mxu0 0
        %406 = vmatpush1.bf16.msra.mxu0 %v337
        %407 = vmatprep.subr.bf16.mxu0 0
        %408 = vmatpush1.bf16.msra.mxu0 %v336
        %409 = vmatprep.subr.bf16.mxu0 0
        %410 = vmatpush2.bf16.msra.mxu0 0
        %411 = vmatprep.subr.bf16.mxu0 0
        %412 = vmatpush2.bf16.msra.mxu0 0
        %413 = vmatprep.subr.bf16.mxu0 0
        %414 = vmatpush2.bf16.msra.mxu0 0
        %415 = vmatprep.subr.bf16.mxu0 0
        %416 = vmatpush2.bf16.msra.mxu0 0
        %417 = vmatprep.subr.bf16.mxu0 0
        %418 = vmatpush2.bf16.msra.mxu0 0
        %419 = vmatprep.subr.bf16.mxu0 0
        %420 = vmatpush2.bf16.msra.mxu0 0
        %421 = vmatprep.subr.bf16.mxu0 0
        %422 = vmatpush2.bf16.msra.mxu0 0
        %423 = vmatprep.subr.bf16.mxu0 0
        %424 = vmatpush2.bf16.msra.mxu0 0
        %425 = vmatprep.mubr.bf16.mxu0 0
        %426 = vmatmul.mubr.bf16.gmra.mxu0 %v346
        %v427 = vpop.f32.mrf.mxu0
        %v428 = vadd.f32 %v246, %v427
        %v429 = vpop.f32.mrf.mxu0
        %v430 = vpop.f32.mrf.mxu0
        %v431 = vadd.f32 %v246, %v430
        %v432 = vpop.f32.mrf.mxu0
        %433 = vmatprep.mubr.bf16.mxu0 0
        %434 = vmatmul.mubr.bf16.gmra.mxu0 %v349
        %v435 = vpop.f32.mrf.mxu0
        %v436 = vadd.f32 %v246, %v435
        %v437 = vpop.f32.mrf.mxu0
        %v438 = vpop.f32.mrf.mxu0
        %v439 = vadd.f32 %v246, %v438
        %v440 = vpop.f32.mrf.mxu0
        %441 = vmatprep.mubr.bf16.mxu0 0
        %442 = vmatmul.mubr.bf16.gmra.mxu0 %v352
        %v443 = vpop.f32.mrf.mxu0
        %v444 = vadd.f32 %v246, %v443
        %v445 = vpop.f32.mrf.mxu0
        %v446 = vpop.f32.mrf.mxu0
        %v447 = vadd.f32 %v246, %v446
        %v448 = vpop.f32.mrf.mxu0
        %449 = vmatprep.mubr.bf16.mxu0 0
        %450 = vmatmul.mubr.bf16.gmra.mxu0 %v355
        %v451 = vpop.f32.mrf.mxu0
        %v452 = vadd.f32 %v246, %v451
        %v453 = vpop.f32.mrf.mxu0
        %v454 = vpop.f32.mrf.mxu0
        %v455 = vadd.f32 %v246, %v454
        %v456 = vpop.f32.mrf.mxu0
        %457 = vmatprep.mubr.bf16.mxu0 0
        %458 = vmatmul.mubr.bf16.gmra.mxu0 %v358
        %v459 = vpop.f32.mrf.mxu0
        %v460 = vadd.f32 %v246, %v459
        %v461 = vpop.f32.mrf.mxu0
        %v462 = vpop.f32.mrf.mxu0
        %v463 = vadd.f32 %v246, %v462
        %v464 = vpop.f32.mrf.mxu0
        %465 = vmatprep.mubr.bf16.mxu0 0
        %466 = vmatmul.mubr.bf16.gmra.mxu0 %v361
        %v467 = vpop.f32.mrf.mxu0
        %v468 = vadd.f32 %v246, %v467
        %v469 = vpop.f32.mrf.mxu0
        %v470 = vpop.f32.mrf.mxu0
        %v471 = vadd.f32 %v246, %v470
        %v472 = vpop.f32.mrf.mxu0
        %473 = vmatprep.mubr.bf16.mxu0 0
        %474 = vmatmul.mubr.bf16.gmra.mxu0 %v364
        %v475 = vpop.f32.mrf.mxu0
        %v476 = vadd.f32 %v246, %v475
        %v477 = vpop.f32.mrf.mxu0
        %v478 = vpop.f32.mrf.mxu0
        %v479 = vadd.f32 %v246, %v478
        %v480 = vpop.f32.mrf.mxu0
        %481 = vmatprep.mubr.bf16.mxu0 0
        %482 = vmatmul.mubr.bf16.gmra.mxu0 %v367
        %v483 = vpop.f32.mrf.mxu0
        %v484 = vadd.f32 %v246, %v483
        %v485 = vpop.f32.mrf.mxu0
        %v486 = vpop.f32.mrf.mxu0
        %v487 = vadd.f32 %v246, %v486
        %v488 = vpop.f32.mrf.mxu0
        %489 = vmatprep.mubr.bf16.mxu0 0
        %490 = vmatmul.mubr.bf16.gmra.mxu0 %v370
        %v491 = vpop.f32.mrf.mxu0
        %v492 = vadd.f32 %v246, %v491
        %v493 = vpop.f32.mrf.mxu0
        %v494 = vpop.f32.mrf.mxu0
        %v495 = vadd.f32 %v246, %v494
        %v496 = vpop.f32.mrf.mxu0
        %497 = vmatprep.mubr.bf16.mxu0 0
        %498 = vmatmul.mubr.bf16.gmra.mxu0 %v373
        %v499 = vpop.f32.mrf.mxu0
        %v500 = vadd.f32 %v246, %v499
        %v501 = vpop.f32.mrf.mxu0
        %v502 = vpop.f32.mrf.mxu0
        %v503 = vadd.f32 %v246, %v502
        %v504 = vpop.f32.mrf.mxu0
        %505 = vmatprep.mubr.bf16.mxu0 0
        %506 = vmatmul.mubr.bf16.gmra.mxu0 %v376
        %v507 = vpop.f32.mrf.mxu0
        %v508 = vadd.f32 %v246, %v507
        %v509 = vpop.f32.mrf.mxu0
        %v510 = vpop.f32.mrf.mxu0
        %v511 = vadd.f32 %v246, %v510
        %v512 = vpop.f32.mrf.mxu0
        %513 = vmatprep.mubr.bf16.mxu0 0
        %514 = vmatmul.mubr.bf16.gmra.mxu0 %v379
        %v515 = vpop.f32.mrf.mxu0
        %v516 = vadd.f32 %v246, %v515
        %v517 = vpop.f32.mrf.mxu0
        %v518 = vpop.f32.mrf.mxu0
        %v519 = vadd.f32 %v246, %v518
        %v520 = vpop.f32.mrf.mxu0
        %521 = vmatprep.mubr.bf16.mxu0 0
        %522 = vmatmul.mubr.bf16.gmra.mxu0 %v382
        %v523 = vpop.f32.mrf.mxu0
        %v524 = vadd.f32 %v246, %v523
        %v525 = vpop.f32.mrf.mxu0
        %v526 = vpop.f32.mrf.mxu0
        %v527 = vadd.f32 %v246, %v526
        %v528 = vpop.f32.mrf.mxu0
        %529 = vmatprep.mubr.bf16.mxu0 0
        %530 = vmatmul.mubr.bf16.gmra.mxu0 %v385
        %v531 = vpop.f32.mrf.mxu0
        %v532 = vadd.f32 %v246, %v531
        %v533 = vpop.f32.mrf.mxu0
        %v534 = vpop.f32.mrf.mxu0
        %v535 = vadd.f32 %v246, %v534
        %v536 = vpop.f32.mrf.mxu0
        %537 = vmatprep.mubr.bf16.mxu0 0
        %538 = vmatmul.mubr.bf16.gmra.mxu0 %v388
        %v539 = vpop.f32.mrf.mxu0
        %v540 = vadd.f32 %v246, %v539
        %v541 = vpop.f32.mrf.mxu0
        %v542 = vpop.f32.mrf.mxu0
        %v543 = vadd.f32 %v246, %v542
        %v544 = vpop.f32.mrf.mxu0
        %545 = vmatprep.mubr.bf16.mxu0 0
        %546 = vmatmul.mubr.bf16.gmra.mxu0 %v391
        %v547 = vpop.f32.mrf.mxu0
        %v548 = vadd.f32 %v246, %v547
        %v549 = vpop.f32.mrf.mxu0
        %v550 = vpop.f32.mrf.mxu0
        %v551 = vadd.f32 %v246, %v550
        %v552 = vpop.f32.mrf.mxu0
        %553 = vdwg.mxu0
        %554 = vst [vmem:[%s221] sm:$0xff] %v428
        %555 = vst [vmem:[%s221 + $0x8] sm:$0xff] %v431
        %556 = vst [vmem:[%s221 + $0x10] sm:$0xff] %v436
        %557 = vst [vmem:[%s221 + $0x18] sm:$0xff] %v439
        %558 = vst [vmem:[%s221 + $0x20] sm:$0xff] %v444
        %559 = vst [vmem:[%s221 + $0x28] sm:$0xff] %v447
        %560 = vst [vmem:[%s221 + $0x30] sm:$0xff] %v452
        %561 = vst [vmem:[%s221 + $0x38] sm:$0xff] %v455
        %562 = vst [vmem:[%s221 + $0x40] sm:$0xff] %v460
        %563 = vst [vmem:[%s221 + $0x48] sm:$0xff] %v463
        %564 = vst [vmem:[%s221 + $0x50] sm:$0xff] %v468
        %565 = vst [vmem:[%s221 + $0x58] sm:$0xff] %v471
        %566 = vst [vmem:[%s221 + $0x60] sm:$0xff] %v476
        %567 = vst [vmem:[%s221 + $0x68] sm:$0xff] %v479
        %568 = vst [vmem:[%s221 + $0x70] sm:$0xff] %v484
        %569 = vst [vmem:[%s221 + $0x78] sm:$0xff] %v487
        %570 = vst [vmem:[%s221 + $0x80] sm:$0xff] %v492
        %571 = vst [vmem:[%s221 + $0x88] sm:$0xff] %v495
        %572 = vst [vmem:[%s221 + $0x90] sm:$0xff] %v500
        %573 = vst [vmem:[%s221 + $0x98] sm:$0xff] %v503
        %574 = vst [vmem:[%s221 + $0xa0] sm:$0xff] %v508
        %575 = vst [vmem:[%s221 + $0xa8] sm:$0xff] %v511
        %576 = vst [vmem:[%s221 + $0xb0] sm:$0xff] %v516
        %577 = vst [vmem:[%s221 + $0xb8] sm:$0xff] %v519
        %578 = vst [vmem:[%s221 + $0xc0] sm:$0xff] %v524
        %579 = vst [vmem:[%s221 + $0xc8] sm:$0xff] %v527
        %580 = vst [vmem:[%s221 + $0xd0] sm:$0xff] %v532
        %581 = vst [vmem:[%s221 + $0xd8] sm:$0xff] %v535
        %582 = vst [vmem:[%s221 + $0xe0] sm:$0xff] %v540
        %583 = vst [vmem:[%s221 + $0xe8] sm:$0xff] %v543
        %584 = vst [vmem:[%s221 + $0xf0] sm:$0xff] %v548
        %585 = vst [vmem:[%s221 + $0xf8] sm:$0xff] %v551
        %s586 = sand.u32 %s113, 1
        %s587 = scalar_lea.sflag [#allocation4], %s586
        %s588 = sand.u32 %s113, 1
        %s589 = smul.addr %s588, 256
        %s590 = scalar_lea.vmem [#allocation7], %s589
        // Predicated region
        $region41: #{tpu_custom_call.1} parent=31 // pred_check
          %p591 = pneg %p123
        $region42: #{tpu_custom_call.1} parent=31 // pred_check_branch
          %593 = sbr.rel (%p591) target = $region44
        $region43: #{tpu_custom_call.1} parent=31 // pred_region
          %s594 = smul.u32 32, %s26
          %s596 = ssub.s32 4096, 4096
          %597 = vsyncadd %s587, %s596
          %s598 = smul.addr %s25, 32
          %s599 = sadd.s32 %s594, %s598
          %s600 = smul.addr %s599, 128
          %s601 = scalar_lea.hbm %s3, %s600
          %s602 = sshll.u32 %s590, 4
          %s603 = int_to_ptr.vmem [resolvable:$true] %s602
          %608 = dma.vmem_to_hbm [thread:$0]  %s603, 4096, %s601, %s587, 128, 128, 8
        $region44: #{tpu_custom_call.1} parent=31 // pred_fallthru
          _
      $region32: #{tpu_custom_call.1} parent=5 // pred_fallthru
        _
      %p609 = scmp.le.s32.totalorder 2, %s16
      // Predicated region
      $region45: #{tpu_custom_call.1} parent=5 // pred_check
        %p610 = pneg %p609
      $region46: #{tpu_custom_call.1} parent=5 // pred_check_branch
        %612 = sbr.rel (%p610) target = $region48
      $region47: #{tpu_custom_call.1} parent=5 // pred_region
        %s613 = ssub.s32 %s16, 2
        // Predicated region
        $region49: #{tpu_custom_call.1} parent=47 // pred_check
          %p614 = pneg %p129
        $region50: #{tpu_custom_call.1} parent=47 // pred_check_branch
          %616 = sbr.rel (%p614) target = $region52
        $region51: #{tpu_custom_call.1} parent=47 // pred_region
          %s617 = sand.u32 %s114, 1
          %s618 = scalar_lea.sflag [#allocation4], %s617
          %s619 = sand.u32 %s114, 1
          %s620 = smul.addr %s619, 256
          %s621 = scalar_lea.vmem [#allocation7], %s620
          %622 = dma.done %s618, 4096
        $region52: #{tpu_custom_call.1} parent=47 // pred_fallthru
          _
      $region48: #{tpu_custom_call.1} parent=5 // pred_fallthru
        _
    $region6: #{tpu_custom_call.1} parent=1 // loop_footer
      %s20 = sadd.s32 1, %s16
    $region7: #{tpu_custom_call.1} parent=1 // loop_footer_branch
      %15 = sbr.rel target = $region3
    $region8: #{tpu_custom_call.1} parent=1 // loop_exit
      _
    %623 = vsyncpa [#allocation3], 1
    %s624 = scalar_lea.sflag [#allocation3], 1
    %625 = vsyncpa %s624, 1
    %626 = vsyncpa [#allocation6], 1
    %627 = vsyncpa [#allocation4], 1
    %s628 = scalar_lea.sflag [#allocation4], 1
    %629 = vsyncpa %s628, 1

</llo_original>
